<compile_context>
chip_gen: v7x
topology: tpu7x:2x2x1
jax: 0.10.0
libtpu: 0.0.40
codegen_flags: <defaults>
</compile_context>

<pallas_src>
import jax
import jax.numpy as jnp
import numpy as np
from jax.experimental import pallas as pl
from jax.experimental.pallas import tpu as pltpu

EPS = 1e-5
ROW_TILE_TARGET = 512   # 512-row tiles: near HBM roofline for mem-bound streams

_PAR1 = pltpu.CompilerParams(dimension_semantics=("parallel",))
_PAR2 = pltpu.CompilerParams(dimension_semantics=("parallel", "parallel"))


def _pick_tile_rows(n, cap=ROW_TILE_TARGET):
    """Largest legal row tile: a multiple of 8 dividing n, or the full extent."""
    if n <= cap:
        return n
    d = (cap // 8) * 8
    while d >= 8:
        if n % d == 0:
            return d
        d -= 8
    # TODO(synk): pad rows (with masked BN stats) when no aligned divisor exists.
    return n


def _pick_group_tile(n_groups, rows_per_group, cap_rows=1024):
    """How many (batch, out-row) groups per K1 tile (tile rows must be 8-aligned)."""
    cand = [d for d in range(1, n_groups + 1)
            if n_groups % d == 0
            and d * rows_per_group <= cap_rows
            and (d * rows_per_group) % 8 == 0]
    return max(cand) if cand else n_groups


# ----------------------------------------------------------------------------
# K1: ConvTranspose2d(kernel=k, stride=k, pad=0, no bias) fused with the pixel
#     shuffle: writes xu directly in channels-last row order.
#     Grid = (group-of-(b,i) chunks, di).  Output array (b*w, k, h, k*F_l)
#     flattens contiguously to (b*W*H, F_l).
# ----------------------------------------------------------------------------
def _upconv_ps_kernel(x_ref, w_ref, o_ref):
    z = jnp.dot(x_ref[...], w_ref[0], preferred_element_type=jnp.float32)
    o_ref[...] = z.reshape(o_ref.shape)      # pure leading-dim split: no relayout


def _upconv_pixel_shuffle(x, wt, k, F_l):
    b, x_c, w, h = x.shape
    # rows ordered (b, i, j), channels-last
    x_rows = x.transpose(0, 2, 3, 1).reshape(b * w * h, x_c)
    # weight reorganised so columns for a fixed di are (dj, out-channel), c fastest
    wt_r = wt.transpose(2, 0, 3, 1).reshape(k, x_c, k * F_l)
    cbw = _pick_group_tile(b * w, h)
    nbw = (b * w) // cbw
    out = pl.pallas_call(
        _upconv_ps_kernel,
        out_shape=jax.ShapeDtypeStruct((b * w, k, h, k * F_l), jnp.float32),
        grid=(nbw, k),
        in_specs=[
            pl.BlockSpec((cbw * h, x_c), lambda i, di: (i, 0)),
            pl.BlockSpec((1, x_c, k * F_l), lambda i, di: (di, 0, 0)),
        ],
        out_specs=pl.BlockSpec((cbw, 1, h, k * F_l), lambda i, di: (i, di, 0, 0)),
        compiler_params=_PAR2,
    )(x_rows, wt_r)
    return out.reshape(b * w * k * h * k, F_l), x_rows      # contiguous reshape


# ----------------------------------------------------------------------------
# g-branch BatchNorm statistics: one streamed pass over g only.
#     Per-tile partial [sum; sumsq] of g@Wg+bg; cross-tile reduction in JAX.
# ----------------------------------------------------------------------------
def _g_stats_kernel(g_ref, wg_ref, bg_ref, out_ref):
    yg = jnp.dot(g_ref[...], wg_ref[...], preferred_element_type=jnp.float32) + bg_ref[...]
    out_ref[0] = jnp.concatenate(
        [jnp.sum(yg, axis=0, keepdims=True),
         jnp.sum(yg * yg, axis=0, keepdims=True)],
        axis=0)


def _g_branch_stats(g_flat, wg, bg):
    N, F_g = g_flat.shape
    F_int = wg.shape[1]
    tm = _pick_tile_rows(N)
    nt = N // tm
    parts = pl.pallas_call(
        _g_stats_kernel,
        out_shape=jax.ShapeDtypeStruct((nt, 2, F_int), jnp.float32),
        grid=(nt,),
        in_specs=[
            pl.BlockSpec((tm, F_g), lambda i: (i, 0)),
            pl.BlockSpec((F_g, F_int), lambda i: (0, 0)),   # VMEM-resident
            pl.BlockSpec((1, F_int), lambda i: (0, 0)),
        ],
        out_specs=pl.BlockSpec((1, 2, F_int), lambda i: (i, 0, 0)),
        compiler_params=_PAR1,
    )(g_flat, wg, bg)
    return jnp.sum(parts, axis=0)                            # (2, F_int)


def _bn_scale_shift(mean, var, gamma, beta):
    scale = gamma * jax.lax.rsqrt(var + EPS)
    shift = beta - mean * scale
    return scale, shift


def _bn_fold_from_sums(s, ss, n, gamma, beta):
    mean = s / n
    var = jnp.maximum(ss / n - mean * mean, 0.0)
    return _bn_scale_shift(mean, var, gamma, beta)


# ----------------------------------------------------------------------------
# x-branch BatchNorm statistics, derived analytically from the Gram of the
# low-resolution input x (k*k times smaller than xu, so xu is never re-read):
#   Gram(xu) = sum_p Wt_p^T Gram(x) Wt_p ,  colsum(xu) = colsum(x) @ sum_p Wt_p
#   mean(x1) = colsum(xu)/N @ Wx + bx
#   E[x1^2]  = diag(Wx^T Gram(xu)/N Wx) + 2*bx*mean0 + bx^2
# ----------------------------------------------------------------------------
def _x_branch_stats(x_rows, wt, wx, bx, n_rows):
    x_c = x_rows.shape[1]
    F_l = wt.shape[1]
    kk = wt.shape[2] * wt.shape[3]
    wt2 = wt.reshape(x_c, F_l, kk)
    g_x = x_rows.T @ x_rows                                  # (x_c, x_c)  tiny
    cs_x = jnp.sum(x_rows, axis=0)                           # (x_c,)
    g_xu = jnp.einsum('afp,ab,bgp->fg', wt2, g_x, wt2)       # (F_l, F_l)
    cs_xu = jnp.einsum('a,afp->f', cs_x, wt2)                # (F_l,)
    m0 = (cs_xu / n_rows) @ wx                               # (F_int,)
    mean = m0 + bx[0]
    e2 = (jnp.einsum('fj,fg,gj->j', wx, g_xu / n_rows, wx)
          + 2.0 * bx[0] * m0 + bx[0] * bx[0])
    var = jnp.maximum(e2 - mean * mean, 0.0)
    return mean, var


# ----------------------------------------------------------------------------
# K3: psi pre-activation (BN of g1/x1 already folded into Wg'/Wx'/b').
# ----------------------------------------------------------------------------
def _psi_kernel(g_ref, xu_ref, wg_ref, wx_ref, b_ref, wp_ref, bp_ref, psi_ref):
    a = jnp.dot(g_ref[...], wg_ref[...], preferred_element_type=jnp.float32)
    a = a + jnp.dot(xu_ref[...], wx_ref[...], preferred_element_type=jnp.float32)
    p = jnp.maximum(a + b_ref[...], 0.0)                            # ReLU
    psi_ref[...] = jnp.sum(p * wp_ref[...], axis=-1, keepdims=True) + bp_ref[...]


# ----------------------------------------------------------------------------
# K4: out = xu * sigmoid(psi_pre * scale_p + shift_p)
# ----------------------------------------------------------------------------
def _apply_kernel(xu_ref, psi_ref, sc_ref, sh_ref, out_ref):
    psi = jax.nn.sigmoid(psi_ref[...] * sc_ref[...] + sh_ref[...])  # exp -> EUP slot
    out_ref[...] = xu_ref[...] * psi


# ----------------------------------------------------------------------------
# Full forward pass.
# ----------------------------------------------------------------------------
def up_attention_block(g, x, params, k):
    b, F_g, W, H = g.shape
    _, x_c, w, h = x.shape
    F_l = params["wt"].shape[1]
    F_int = params["wg"].shape[1]
    assert w * k == W and h * k == H

    # --- K1: ConvTranspose2d + pixel shuffle, xu written directly -----------
    xu_flat, x_rows = _upconv_pixel_shuffle(x, params["wt"], k, F_l)  # (N, F_l)
    g_flat = g.transpose(0, 2, 3, 1).reshape(b * W * H, F_g)
    N = b * W * H
    n_rows = float(N)

    # --- BatchNorm statistics, then fold BN into the 1x1 convs --------------
    sg = _g_branch_stats(g_flat, params["wg"], params["bg"])
    scale_g, shift_g = _bn_fold_from_sums(sg[0], sg[1], n_rows,
                                          params["gamma_g"], params["beta_g"])
    mean_x1, var_x1 = _x_branch_stats(x_rows, params["wt"],
                                      params["wx"], params["bx"], n_rows)
    scale_x, shift_x = _bn_scale_shift(mean_x1, var_x1,
                                       params["gamma_x"], params["beta_x"])

    wg_eff = params["wg"] * scale_g
    wx_eff = params["wx"] * scale_x
    b_eff = (params["bg"] * scale_g + shift_g
             + params["bx"] * scale_x + shift_x)                    # (1, F_int)

    tm = _pick_tile_rows(N)
    nt = N // tm

    # --- K3: psi pre-activation, streamed row tiles --------------------------
    psi_pre = pl.pallas_call(
        _psi_kernel,
        out_shape=jax.ShapeDtypeStruct((N, 1), jnp.float32),
        grid=(nt,),
        in_specs=[
            pl.BlockSpec((tm, F_g), lambda i: (i, 0)),
            pl.BlockSpec((tm, F_l), lambda i: (i, 0)),
            pl.BlockSpec((F_g, F_int), lambda i: (0, 0)),
            pl.BlockSpec((F_l, F_int), lambda i: (0, 0)),
            pl.BlockSpec((1, F_int), lambda i: (0, 0)),
            pl.BlockSpec((1, F_int), lambda i: (0, 0)),
            pl.BlockSpec((1, 1), lambda i: (0, 0)),
        ],
        out_specs=pl.BlockSpec((tm, 1), lambda i: (i, 0)),
        compiler_params=_PAR1,
    )(g_flat, xu_flat, wg_eff, wx_eff, b_eff, params["wp"], params["bp"])

    # psi BatchNorm (single channel): (N,1) is tiny -> plain JAX
    mu_p = jnp.mean(psi_pre)
    var_p = jnp.maximum(jnp.mean(psi_pre * psi_pre) - mu_p * mu_p, 0.0)
    scale_p = params["gamma_p"] * jax.lax.rsqrt(var_p + EPS)        # (1, 1)
    shift_p = params["beta_p"] - mu_p * scale_p                     # (1, 1)

    # --- K4: out = xu * sigmoid(BN(psi_pre)) ---------------------------------
    out_flat = pl.pallas_call(
        _apply_kernel,
        out_shape=jax.ShapeDtypeStruct((N, F_l), jnp.float32),
        grid=(nt,),
        in_specs=[
            pl.BlockSpec((tm, F_l), lambda i: (i, 0)),
            pl.BlockSpec((tm, 1), lambda i: (i, 0)),
            pl.BlockSpec((1, 1), lambda i: (0, 0)),
            pl.BlockSpec((1, 1), lambda i: (0, 0)),
        ],
        out_specs=pl.BlockSpec((tm, F_l), lambda i: (i, 0)),
        compiler_params=_PAR1,
    )(xu_flat, psi_pre, scale_p, shift_p)

    # TODO(synk): write NCHW directly from K4 (in-kernel (tm,F_l)->(F_l,tm)
    # transpose) to drop this final XLA transpose once validated on-device.
    return out_flat.reshape(b, W, H, F_l).transpose(0, 3, 1, 2)     # [b, F_l, W, H]


# ----------------------------------------------------------------------------
# Pure-JAX reference (identical math, no Pallas) for validation.
# ----------------------------------------------------------------------------
def reference_forward(g, x, params, k):
    b, F_g, W, H = g.shape
    _, x_c, w, h = x.shape
    F_l = params["wt"].shape[1]

    x_flat = x.transpose(0, 2, 3, 1).reshape(b * w * h, x_c)
    y = x_flat @ params["wt"].reshape(x_c, F_l * k * k)
    x_up = (y.reshape(b, w, h, F_l, k, k)
             .transpose(0, 3, 1, 4, 2, 5)
             .reshape(b, F_l, W, H))

    def bn(v, gamma, beta):
        mu = jnp.mean(v, axis=0, keepdims=True)
        var = jnp.mean((v - mu) ** 2, axis=0, keepdims=True)        # biased var
        return gamma * (v - mu) * jax.lax.rsqrt(var + EPS) + beta

    gf = g.transpose(0, 2, 3, 1).reshape(-1, F_g)
    xf = x_up.transpose(0, 2, 3, 1).reshape(-1, F_l)
    g1 = bn(gf @ params["wg"] + params["bg"], params["gamma_g"], params["beta_g"])
    x1 = bn(xf @ params["wx"] + params["bx"], params["gamma_x"], params["beta_x"])
    p = jnp.maximum(g1 + x1, 0.0)
    psi = jnp.sum(p * params["wp"], axis=-1, keepdims=True) + params["bp"]
    psi = bn(psi, params["gamma_p"], params["beta_p"])
    psi = 1.0 / (1.0 + jnp.exp(-psi))
    out = xf * psi
    return out.reshape(b, W, H, F_l).transpose(0, 3, 1, 2)


# ----------------------------------------------------------------------------
def make_params(key, F_g, F_l, F_int, x_c, k):
    ks = jax.random.split(key, 7)
    f32 = jnp.float32
    return {
        # ConvTranspose2d weight, PyTorch layout [in=x_c, out=F_l, k, k]
        "wt": 0.2 * jax.random.normal(ks[0], (x_c, F_l, k, k), f32),
        # W_g: 1x1 conv as matmul weight [F_g, F_int] + bias
        "wg": 0.2 * jax.random.normal(ks[1], (F_g, F_int), f32),
        "bg": 0.1 * jax.random.normal(ks[2], (1, F_int), f32),
        "gamma_g": jnp.ones((1, F_int), f32),          # BatchNorm default init
        "beta_g": jnp.zeros((1, F_int), f32),
        # W_x
        "wx": 0.2 * jax.random.normal(ks[3], (F_l, F_int), f32),
        "bx": 0.1 * jax.random.normal(ks[4], (1, F_int), f32),
        "gamma_x": jnp.ones((1, F_int), f32),
        "beta_x": jnp.zeros((1, F_int), f32),
        # psi: F_int -> 1 conv stored as a row vector
        "wp": 0.2 * jax.random.normal(ks[5], (1, F_int), f32),
        "bp": 0.1 * jax.random.normal(ks[6], (1, 1), f32),
        "gamma_p": jnp.ones((1, 1), f32),
        "beta_p": jnp.zeros((1, 1), f32),
    }


if __name__ == "__main__":
    # g is [b, F_g, W, H]; x is [b, x_c, w, h] with W = w*k, H = h*k.
    # N = b*W*H = 2048 rows -> 4 row tiles of 512: exercises the tiled grids,
    # the fused pixel-shuffle kernel and the partial-stats reduction.
    b, F_g, F_l, F_int, x_c, k = 2, 8, 8, 8, 4, 2
    w = h = 16
    W, H = w * k, h * k

    key = jax.random.PRNGKey(0)
    kg, kx, kp = jax.random.split(key, 3)
    g = jax.random.normal(kg, (b, F_g, W, H), jnp.float32)
    x = jax.random.normal(kx, (b, x_c, w, h), jnp.float32)
    params = make_params(kp, F_g, F_l, F_int, x_c, k)

    out = jax.block_until_ready(up_attention_block(g, x, params, k))
    ref = jax.block_until_ready(reference_forward(g, x, params, k))

    assert out.shape == (b, F_l, W, H), out.shape
    err = float(np.max(np.abs(np.asarray(out) - np.asarray(ref))))
    assert np.allclose(np.asarray(out), np.asarray(ref), atol=2e-3, rtol=2e-3), err
    print("KERNEL_OK")
</pallas_src>

<mosaic_0001>
module attributes {stable_mosaic.version = 11 : i64} {
  func.func @_upconv_ps_kernel(%arg0: i32, %arg1: i32, %arg2: memref<512x4xf32, #tpu.memory_space<vmem>>, %arg3: memref<1x4x16xf32, #tpu.memory_space<vmem>>, %arg4: memref<32x1x16x16xf32, #tpu.memory_space<vmem>>) attributes {dimension_semantics = [#tpu.dimension_semantics<parallel>, #tpu.dimension_semantics<parallel>], iteration_bounds = array<i64: 1, 2>, scalar_prefetch = 0 : i64, scratch_operands = 0 : i64, tpu.core_type = #tpu.core_type<tc>, window_params = [{transform_indices = @transform_0, window_bounds = array<i64: 512, 4>}, {transform_indices = @transform_1, window_bounds = array<i64: 1, 4, 16>}, {transform_indices = @transform_2, window_bounds = array<i64: 32, 1, 16, 16>}]} {
    %c0 = arith.constant 0 : index
    %c0_0 = arith.constant 0 : index
    %0 = vector.load %arg2[%c0, %c0_0] : memref<512x4xf32, #tpu.memory_space<vmem>>, vector<512x4xf32>
    %c0_1 = arith.constant 0 : index
    %c0_2 = arith.constant 0 : index
    %c0_3 = arith.constant 0 : index
    %1 = vector.load %arg3[%c0_1, %c0_2, %c0_3] : memref<1x4x16xf32, #tpu.memory_space<vmem>>, vector<1x4x16xf32>
    %2 = vector.shape_cast %1 : vector<1x4x16xf32> to vector<4x16xf32>
    %cst = arith.constant dense<0.000000e+00> : vector<512x16xf32>
    %3 = tpu.matmul %0, %2, %cst {dimension_numbers = #tpu.dot_dimension_numbers<[1], [0], [0], [1], [0, 0, 1, 1], [], []>} : vector<512x4xf32>, vector<4x16xf32>, vector<512x16xf32> -> vector<512x16xf32>
    %4 = vector.shape_cast %3 : vector<512x16xf32> to vector<32x1x16x16xf32>
    %c0_4 = arith.constant 0 : index
    %c0_5 = arith.constant 0 : index
    %c0_6 = arith.constant 0 : index
    %c0_7 = arith.constant 0 : index
    %5 = vector.load %arg4[%c0_4, %c0_5, %c0_6, %c0_7] : memref<32x1x16x16xf32, #tpu.memory_space<vmem>>, vector<32x1x16x16xf32>
    tpu.vector_store %arg4[%c0_4, %c0_5, %c0_6, %c0_7], %4 {strides = array<i32>} : memref<32x1x16x16xf32, #tpu.memory_space<vmem>>, vector<32x1x16x16xf32>,
    return
  }
  func.func @transform_0(%arg0: i32, %arg1: i32) -> (i32, i32) {
    %c0_i32 = arith.constant 0 : i32
    %c0_i32_0 = arith.constant 0 : i32
    return %arg0, %c0_i32 : i32, i32
  }
  func.func @transform_1(%arg0: i32, %arg1: i32) -> (i32, i32, i32) {
    %c0_i32 = arith.constant 0 : i32
    %c0_i32_0 = arith.constant 0 : i32
    %c0_i32_1 = arith.constant 0 : i32
    return %arg1, %c0_i32, %c0_i32_0 : i32, i32, i32
  }
  func.func @transform_2(%arg0: i32, %arg1: i32) -> (i32, i32, i32, i32) {
    %c0_i32 = arith.constant 0 : i32
    %c0_i32_0 = arith.constant 0 : i32
    %c0_i32_1 = arith.constant 0 : i32
    return %arg0, %arg1, %c0_i32, %c0_i32_0 : i32, i32, i32, i32
  }
}

</mosaic_0001>

<llo_original>
// kernel: tpu_custom_call.1
$region0: #{tpu_custom_call.1}
  #allocation0 [shape = 'u32[]', space=smem, size = 0x4, offset = 0x4, fixed_abs, tag = 'smem constant byte address 0x4 - core index']
  #allocation1 [shape = 'u32[144,128]{1,0:T(1,128)}', space=vmem, size = 0x12000, scoped, tag = 'internal scratch']
  %s0 = inlined_call_operand.vmem [shape: f32[512,4], index: 0, kind: input, shape index: {}]
  %s1 = inlined_call_operand.vmem [shape: f32[2,4,16], index: 1, kind: input, shape index: {}]
  %s2 = inlined_call_operand.vmem [shape: f32[32,2,16,16], index: 2, kind: output, shape index: {}]
  %s3 = sld [smem:[#allocation0]]
  $region75: #{tpu_custom_call.1} parent=0
    _
  %s5 = ssub.s32 1, %s3
  %s6 = scalar_select 0, %s5, %s3
  $region1: #{tpu_custom_call.1} parent=0
    #allocation2 [shape = 'u8[524288]{0}', space=vmem, size = 0x80000, scoped, tag = 'output window, operand 0']
    loop: start=0, step=1, limit=4
    $region2: #{tpu_custom_call.1} parent=1 // loop_pre_header
      _
    $region3: #{tpu_custom_call.1} parent=1 // loop_header
      %s8 = sphi 0, %s12
      %p9 = scmp.ge.s32.totalorder %s8, 4
      %s15 = sphi 0, %s27
      %s16 = sphi 0, %s23
      %s17 = sphi 0, %s15
      %s18 = sphi 0, %s16
      %s19 = sphi 0, %s17
      %s20 = sphi 0, %s18
      %s30 = sphi 0, %s32
      %s33 = sphi 0, %s30
      %s34 = sphi 0, %s33
      %s50 = sphi 0, %s34
      %s56 = sphi 0, %s58
      %s59 = sphi 0, %s56
      %s60 = sphi 0, %s59
      %s76 = sphi 0, %s60
      %s84 = sphi 0, %s86
      %s87 = sphi 0, %s84
      %s88 = sphi 0, %s87
      %s104 = sphi 0, %s88
    $region4: #{tpu_custom_call.1} parent=1 // loop_header_branch
      %11 = sbr.rel (%p9) target = $region8
    $region5: #{tpu_custom_call.1} parent=1 // loop_body
      %s13 = ssub.s32 %s8, 1
      %s14 = ssub.s32 %s8, 2
      %s21 = sadd.s32 1, %s16
      %p22 = scmp.ge.s32.totalorder %s21, 2
      %s23 = scalar_select %p22, 0, %s21
      %s24 = sadd.s32 1, %s15
      %s25 = scalar_select %p22, %s24, %s15
      %p26 = scmp.ge.s32.totalorder %s25, 1
      %s27 = scalar_select %p26, 0, %s25
      %s28 = ssub.s32 %s15, %s27
      %p29 = scmp.eq.s32.totalorder %s28, 0
      %s31 = sadd.s32 %s30, 1
      %s32 = scalar_select %p29, %s30, %s31
      %p35 = pneg %p29
      %p36 = scmp.eq.s32.totalorder %s8, 1
      %p37 = por %p35, %p36
      %p38 = scmp.ne.s32.totalorder %s30, %s33
      %p39 = scmp.eq.s32.totalorder %s8, 0
      %p40 = por %p38, %p39
      %p41 = scmp.ne.s32.totalorder %s30, %s33
      %p42 = scmp.eq.s32.totalorder %s13, 1
      %p43 = por %p41, %p42
      %p44 = scmp.ne.s32.totalorder %s33, %s34
      %p45 = scmp.eq.s32.totalorder %s13, 0
      %p46 = por %p44, %p45
      %p47 = scmp.ne.s32.totalorder %s33, %s34
      %p48 = scmp.eq.s32.totalorder %s14, 1
      %p49 = por %p47, %p48
      %p51 = scmp.ne.s32.totalorder %s34, %s50
      %p52 = scmp.eq.s32.totalorder %s14, 0
      %p53 = por %p51, %p52
      %s54 = ssub.s32 %s16, %s23
      %p55 = scmp.eq.s32.totalorder %s54, 0
      %s57 = sadd.s32 %s56, 1
      %s58 = scalar_select %p55, %s56, %s57
      %p61 = pneg %p55
      %p62 = scmp.eq.s32.totalorder %s8, 1
      %p63 = por %p61, %p62
      %p64 = scmp.ne.s32.totalorder %s56, %s59
      %p65 = scmp.eq.s32.totalorder %s8, 0
      %p66 = por %p64, %p65
      %p67 = scmp.ne.s32.totalorder %s56, %s59
      %p68 = scmp.eq.s32.totalorder %s13, 1
      %p69 = por %p67, %p68
      %p70 = scmp.ne.s32.totalorder %s59, %s60
      %p71 = scmp.eq.s32.totalorder %s13, 0
      %p72 = por %p70, %p71
      %p73 = scmp.ne.s32.totalorder %s59, %s60
      %p74 = scmp.eq.s32.totalorder %s14, 1
      %p75 = por %p73, %p74
      %p77 = scmp.ne.s32.totalorder %s60, %s76
      %p78 = scmp.eq.s32.totalorder %s14, 0
      %p79 = por %p77, %p78
      %s80 = ssub.s32 %s15, %s27
      %s81 = ssub.s32 %s16, %s23
      %s82 = sor.u32 %s80, %s81
      %p83 = scmp.eq.s32.totalorder %s82, 0
      %s85 = sadd.s32 %s84, 1
      %s86 = scalar_select %p83, %s84, %s85
      %p89 = pneg %p83
      %p90 = scmp.eq.s32.totalorder %s8, 1
      %p91 = por %p89, %p90
      %p92 = scmp.ne.s32.totalorder %s84, %s87
      %p93 = scmp.eq.s32.totalorder %s8, 0
      %p94 = por %p92, %p93
      %p95 = scmp.ne.s32.totalorder %s84, %s87
      %p96 = scmp.eq.s32.totalorder %s13, 1
      %p97 = por %p95, %p96
      %p98 = scmp.ne.s32.totalorder %s87, %s88
      %p99 = scmp.eq.s32.totalorder %s13, 0
      %p100 = por %p98, %p99
      %p101 = scmp.ne.s32.totalorder %s87, %s88
      %p102 = scmp.eq.s32.totalorder %s14, 1
      %p103 = por %p101, %p102
      %p105 = scmp.ne.s32.totalorder %s88, %s104
      %p106 = scmp.eq.s32.totalorder %s14, 0
      %p107 = por %p105, %p106
      %p108 = scmp.le.s32.totalorder 1, %s8
      %p109 = scmp.lt.s32.totalorder %s8, 3
      %p110 = pnand %p108, %p109
      %p111 = pneg %p110
      // Predicated region
      $region9: #{tpu_custom_call.1} parent=5 // pred_check
        _
      $region10: #{tpu_custom_call.1} parent=5 // pred_check_branch
        %113 = sbr.rel (%p110) target = $region12
      $region11: #{tpu_custom_call.1} parent=5 // pred_region
        %s114 = ssub.s32 %s8, 1
        // Predicated region
        $region13: #{tpu_custom_call.1} parent=11 // pred_check
          %p115 = pneg %p46
        $region14: #{tpu_custom_call.1} parent=11 // pred_check_branch
          %117 = sbr.rel (%p115) target = $region16
        $region15: #{tpu_custom_call.1} parent=11 // pred_region
          %s118 = smul.u32 64, %s17
          %p119 = scmp.lt.s32.totalorder %s118, 63
          %s120 = scalar_select %p119, %s118, 63
          %s121 = smul.addr %s120, 8
          %s122 = scalar_lea.vmem %s0, %s121
          %s123 = smul.u32 64, %s17
        $region16: #{tpu_custom_call.1} parent=11 // pred_fallthru
          _
      $region12: #{tpu_custom_call.1} parent=5 // pred_fallthru
        _
      %p124 = scmp.lt.s32.totalorder %s8, 2
      // Predicated region
      $region17: #{tpu_custom_call.1} parent=5 // pred_check
        %p125 = pneg %p124
      $region18: #{tpu_custom_call.1} parent=5 // pred_check_branch
        %127 = sbr.rel (%p125) target = $region20
      $region19: #{tpu_custom_call.1} parent=5 // pred_region
        // Predicated region
        $region21: #{tpu_custom_call.1} parent=19 // pred_check
          %p128 = pneg %p66
        $region22: #{tpu_custom_call.1} parent=19 // pred_check_branch
          %130 = sbr.rel (%p128) target = $region24
        $region23: #{tpu_custom_call.1} parent=19 // pred_region
          %p131 = scmp.lt.s32.totalorder %s16, 1
          %s132 = scalar_select %p131, %s16, 1
          %s133 = smul.addr %s132, 4
          %s134 = scalar_lea.vmem %s1, %s133
        $region24: #{tpu_custom_call.1} parent=19 // pred_fallthru
          _
      $region20: #{tpu_custom_call.1} parent=5 // pred_fallthru
        _
      %p135 = scmp.le.s32.totalorder 1, %s8
      %p136 = scmp.lt.s32.totalorder %s8, 3
      %p137 = pnand %p135, %p136
      %p138 = pneg %p137
      // Predicated region
      $region25: #{tpu_custom_call.1} parent=5 // pred_check
        _
      $region26: #{tpu_custom_call.1} parent=5 // pred_check_branch
        %140 = sbr.rel (%p137) target = $region28
      $region27: #{tpu_custom_call.1} parent=5 // pred_region
        %s141 = ssub.s32 %s8, 1
        %s142 = smul.u32 64, %s17
        %p143 = scmp.lt.s32.totalorder %s142, 63
        %s144 = scalar_select %p143, %s142, 63
        %s145 = smul.addr %s144, 8
        %s146 = scalar_lea.vmem %s0, %s145
        %p147 = pneg %p46
        %p148 = pneg %p43
        %p149 = scmp.lt.s32.totalorder %s18, 1
        %s150 = scalar_select %p149, %s18, 1
        %s151 = smul.addr %s150, 4
        %s152 = scalar_lea.vmem %s1, %s151
        %p153 = pneg %p72
        %p154 = pneg %p69
        %p155 = pneg %p100
        %p156 = pneg %p97
        %s157 = sand.u32 %s87, 1
        %s158 = sand.u32 %s87, 1
        %s159 = smul.addr %s158, 512
        %s160 = scalar_lea.vmem [#allocation2], %s159
        %s161 = smul.u32 64, %s17
        %p162 = scmp.lt.s32.totalorder %s161, 63
        %s163 = scalar_select %p162, %s161, 63
        %s164 = smul.addr %s163, 8
        %s165 = scalar_lea.vmem %s0, %s164
        %s166 = smul.u32 64, %s17
        %p167 = scmp.lt.s32.totalorder %s18, 1
        %s168 = scalar_select %p167, %s18, 1
        %s169 = smul.addr %s168, 4
        %s170 = scalar_lea.vmem %s1, %s169
        %s171 = smul.u32 32, %s17
        %v172 = vld [vmem:[%s165] sm:$0xff]
        %v173 = vld [vmem:[%s165 + $0x8] sm:$0xff]
        %v174 = vld [vmem:[%s165 + $0x10] sm:$0xff]
        %v175 = vld [vmem:[%s165 + $0x18] sm:$0xff]
        %v176 = vld [vmem:[%s165 + $0x20] sm:$0xff]
        %v177 = vld [vmem:[%s165 + $0x28] sm:$0xff]
        %v178 = vld [vmem:[%s165 + $0x30] sm:$0xff]
        %v179 = vld [vmem:[%s165 + $0x38] sm:$0xff]
        %v180 = vld [vmem:[%s165 + $0x40] sm:$0xff]
        %v181 = vld [vmem:[%s165 + $0x48] sm:$0xff]
        %v182 = vld [vmem:[%s165 + $0x50] sm:$0xff]
        %v183 = vld [vmem:[%s165 + $0x58] sm:$0xff]
        %v184 = vld [vmem:[%s165 + $0x60] sm:$0xff]
        %v185 = vld [vmem:[%s165 + $0x68] sm:$0xff]
        %v186 = vld [vmem:[%s165 + $0x70] sm:$0xff]
        %v187 = vld [vmem:[%s165 + $0x78] sm:$0xff]
        %v188 = vld [vmem:[%s165 + $0x80] sm:$0xff]
        %v189 = vld [vmem:[%s165 + $0x88] sm:$0xff]
        %v190 = vld [vmem:[%s165 + $0x90] sm:$0xff]
        %v191 = vld [vmem:[%s165 + $0x98] sm:$0xff]
        %v192 = vld [vmem:[%s165 + $0xa0] sm:$0xff]
        %v193 = vld [vmem:[%s165 + $0xa8] sm:$0xff]
        %v194 = vld [vmem:[%s165 + $0xb0] sm:$0xff]
        %v195 = vld [vmem:[%s165 + $0xb8] sm:$0xff]
        %v196 = vld [vmem:[%s165 + $0xc0] sm:$0xff]
        %v197 = vld [vmem:[%s165 + $0xc8] sm:$0xff]
        %v198 = vld [vmem:[%s165 + $0xd0] sm:$0xff]
        %v199 = vld [vmem:[%s165 + $0xd8] sm:$0xff]
        %v200 = vld [vmem:[%s165 + $0xe0] sm:$0xff]
        %v201 = vld [vmem:[%s165 + $0xe8] sm:$0xff]
        %v202 = vld [vmem:[%s165 + $0xf0] sm:$0xff]
        %v203 = vld [vmem:[%s165 + $0xf8] sm:$0xff]
        %v204 = vld [vmem:[%s165 + $0x100] sm:$0xff]
        %v205 = vld [vmem:[%s165 + $0x108] sm:$0xff]
        %v206 = vld [vmem:[%s165 + $0x110] sm:$0xff]
        %v207 = vld [vmem:[%s165 + $0x118] sm:$0xff]
        %v208 = vld [vmem:[%s165 + $0x120] sm:$0xff]
        %v209 = vld [vmem:[%s165 + $0x128] sm:$0xff]
        %v210 = vld [vmem:[%s165 + $0x130] sm:$0xff]
        %v211 = vld [vmem:[%s165 + $0x138] sm:$0xff]
        %v212 = vld [vmem:[%s165 + $0x140] sm:$0xff]
        %v213 = vld [vmem:[%s165 + $0x148] sm:$0xff]
        %v214 = vld [vmem:[%s165 + $0x150] sm:$0xff]
        %v215 = vld [vmem:[%s165 + $0x158] sm:$0xff]
        %v216 = vld [vmem:[%s165 + $0x160] sm:$0xff]
        %v217 = vld [vmem:[%s165 + $0x168] sm:$0xff]
        %v218 = vld [vmem:[%s165 + $0x170] sm:$0xff]
        %v219 = vld [vmem:[%s165 + $0x178] sm:$0xff]
        %v220 = vld [vmem:[%s165 + $0x180] sm:$0xff]
        %v221 = vld [vmem:[%s165 + $0x188] sm:$0xff]
        %v222 = vld [vmem:[%s165 + $0x190] sm:$0xff]
        %v223 = vld [vmem:[%s165 + $0x198] sm:$0xff]
        %v224 = vld [vmem:[%s165 + $0x1a0] sm:$0xff]
        %v225 = vld [vmem:[%s165 + $0x1a8] sm:$0xff]
        %v226 = vld [vmem:[%s165 + $0x1b0] sm:$0xff]
        %v227 = vld [vmem:[%s165 + $0x1b8] sm:$0xff]
        %v228 = vld [vmem:[%s165 + $0x1c0] sm:$0xff]
        %v229 = vld [vmem:[%s165 + $0x1c8] sm:$0xff]
        %v230 = vld [vmem:[%s165 + $0x1d0] sm:$0xff]
        %v231 = vld [vmem:[%s165 + $0x1d8] sm:$0xff]
        %v232 = vld [vmem:[%s165 + $0x1e0] sm:$0xff]
        %v233 = vld [vmem:[%s165 + $0x1e8] sm:$0xff]
        %v234 = vld [vmem:[%s165 + $0x1f0] sm:$0xff]
        %v235 = vld [vmem:[%s165 + $0x1f8] sm:$0xff]
        %v236 = vld [vmem:[%s170] sm:$0xf]
        %vm237 = vcmask 31744
        %v239 = vsel %vm237, %v172, 0
        %v242 = vsel %vm237, %v173, 0
        %v245 = vsel %vm237, %v174, 0
        %v248 = vsel %vm237, %v175, 0
        %v251 = vsel %vm237, %v176, 0
        %v254 = vsel %vm237, %v177, 0
        %v257 = vsel %vm237, %v178, 0
        %v260 = vsel %vm237, %v179, 0
        %v263 = vsel %vm237, %v180, 0
        %v266 = vsel %vm237, %v181, 0
        %v269 = vsel %vm237, %v182, 0
        %v272 = vsel %vm237, %v183, 0
        %v275 = vsel %vm237, %v184, 0
        %v278 = vsel %vm237, %v185, 0
        %v281 = vsel %vm237, %v186, 0
        %v284 = vsel %vm237, %v187, 0
        %v287 = vsel %vm237, %v188, 0
        %v290 = vsel %vm237, %v189, 0
        %v293 = vsel %vm237, %v190, 0
        %v296 = vsel %vm237, %v191, 0
        %v299 = vsel %vm237, %v192, 0
        %v302 = vsel %vm237, %v193, 0
        %v305 = vsel %vm237, %v194, 0
        %v308 = vsel %vm237, %v195, 0
        %v311 = vsel %vm237, %v196, 0
        %v314 = vsel %vm237, %v197, 0
        %v317 = vsel %vm237, %v198, 0
        %v320 = vsel %vm237, %v199, 0
        %v323 = vsel %vm237, %v200, 0
        %v326 = vsel %vm237, %v201, 0
        %v329 = vsel %vm237, %v202, 0
        %v332 = vsel %vm237, %v203, 0
        %v335 = vsel %vm237, %v204, 0
        %v338 = vsel %vm237, %v205, 0
        %v341 = vsel %vm237, %v206, 0
        %v344 = vsel %vm237, %v207, 0
        %v347 = vsel %vm237, %v208, 0
        %v350 = vsel %vm237, %v209, 0
        %v353 = vsel %vm237, %v210, 0
        %v356 = vsel %vm237, %v211, 0
        %v359 = vsel %vm237, %v212, 0
        %v362 = vsel %vm237, %v213, 0
        %v365 = vsel %vm237, %v214, 0
        %v368 = vsel %vm237, %v215, 0
        %v371 = vsel %vm237, %v216, 0
        %v374 = vsel %vm237, %v217, 0
        %v377 = vsel %vm237, %v218, 0
        %v380 = vsel %vm237, %v219, 0
        %v383 = vsel %vm237, %v220, 0
        %v386 = vsel %vm237, %v221, 0
        %v389 = vsel %vm237, %v222, 0
        %v392 = vsel %vm237, %v223, 0
        %v395 = vsel %vm237, %v224, 0
        %v398 = vsel %vm237, %v225, 0
        %v401 = vsel %vm237, %v226, 0
        %v404 = vsel %vm237, %v227, 0
        %v407 = vsel %vm237, %v228, 0
        %v410 = vsel %vm237, %v229, 0
        %v413 = vsel %vm237, %v230, 0
        %v416 = vsel %vm237, %v231, 0
        %v419 = vsel %vm237, %v232, 0
        %v422 = vsel %vm237, %v233, 0
        %v425 = vsel %vm237, %v234, 0
        %v428 = vsel %vm237, %v235, 0
        %vm430 = vcmask 1043456
        %v432 = vsel %vm430, %v236, 0
        %434 = vmatprep.subr.mxu0 0.0
        %435 = vmatpush1.msra.mxu0 %v432
        %436 = vmatprep.subr.mxu0 0.0
        %437 = vmatpush1.msra.mxu0 0.0
        %438 = vmatprep.subr.mxu0 0.0
        %439 = vmatpush1.msra.mxu0 0.0
        %440 = vmatprep.subr.mxu0 0.0
        %441 = vmatpush1.msra.mxu0 0.0
        %442 = vmatprep.subr.mxu0 0.0
        %443 = vmatpush1.msra.mxu0 0.0
        %444 = vmatprep.subr.mxu0 0.0
        %445 = vmatpush1.msra.mxu0 0.0
        %446 = vmatprep.subr.mxu0 0.0
        %447 = vmatpush1.msra.mxu0 0.0
        %448 = vmatprep.subr.mxu0 0.0
        %449 = vmatpush1.msra.mxu0 0.0
        %450 = vmatprep.subr.mxu0 0.0
        %451 = vmatpush1.msra.mxu0 0.0
        %452 = vmatprep.subr.mxu0 0.0
        %453 = vmatpush1.msra.mxu0 0.0
        %454 = vmatprep.subr.mxu0 0.0
        %455 = vmatpush1.msra.mxu0 0.0
        %456 = vmatprep.subr.mxu0 0.0
        %457 = vmatpush1.msra.mxu0 0.0
        %458 = vmatprep.subr.mxu0 0.0
        %459 = vmatpush1.msra.mxu0 0.0
        %460 = vmatprep.subr.mxu0 0.0
        %461 = vmatpush1.msra.mxu0 0.0
        %462 = vmatprep.subr.mxu0 0.0
        %463 = vmatpush1.msra.mxu0 0.0
        %464 = vmatprep.subr.mxu0 0.0
        %465 = vmatpush1.msra.mxu0 0.0
        %466 = vmatprep.subr.mxu0 0.0
        %467 = vmatpush1.msra.mxu0 0.0
        %468 = vmatprep.subr.mxu0 0.0
        %469 = vmatpush1.msra.mxu0 0.0
        %470 = vmatprep.subr.mxu0 0.0
        %471 = vmatpush1.msra.mxu0 0.0
        %472 = vmatprep.subr.mxu0 0.0
        %473 = vmatpush1.msra.mxu0 0.0
        %474 = vmatprep.subr.mxu0 0.0
        %475 = vmatpush1.msra.mxu0 0.0
        %476 = vmatprep.subr.mxu0 0.0
        %477 = vmatpush1.msra.mxu0 0.0
        %478 = vmatprep.subr.mxu0 0.0
        %479 = vmatpush1.msra.mxu0 0.0
        %480 = vmatprep.subr.mxu0 0.0
        %481 = vmatpush1.msra.mxu0 0.0
        %482 = vmatprep.subr.mxu0 0.0
        %483 = vmatpush1.msra.mxu0 0.0
        %484 = vmatprep.subr.mxu0 0.0
        %485 = vmatpush1.msra.mxu0 0.0
        %486 = vmatprep.subr.mxu0 0.0
        %487 = vmatpush1.msra.mxu0 0.0
        %488 = vmatprep.subr.mxu0 0.0
        %489 = vmatpush1.msra.mxu0 0.0
        %490 = vmatprep.subr.mxu0 0.0
        %491 = vmatpush1.msra.mxu0 0.0
        %492 = vmatprep.subr.mxu0 0.0
        %493 = vmatpush1.msra.mxu0 0.0
        %494 = vmatprep.subr.mxu0 0.0
        %495 = vmatpush1.msra.mxu0 0.0
        %496 = vmatprep.subr.mxu0 0.0
        %497 = vmatpush1.msra.mxu0 0.0
        %498 = vmatprep.mubr.f32.mxu0 0.0
        %499 = vmatmul.mubr.f32.gmra.mrb[0].mxu0 %v239
        %v500 = vpop.f32.mrb[0].mxu0
        %v501 = vadd.f32 0.0, %v500
        %v502 = vpop.f32.mrb[0].mxu0
        %503 = vmatprep.mubr.f32.mxu0 0.0
        %504 = vmatmul.mubr.f32.gmra.mrb[0].mxu0 %v242
        %v505 = vpop.f32.mrb[0].mxu0
        %v506 = vadd.f32 0.0, %v505
        %v507 = vpop.f32.mrb[0].mxu0
        %508 = vmatprep.mubr.f32.mxu0 0.0
        %509 = vmatmul.mubr.f32.gmra.mrb[0].mxu0 %v245
        %v510 = vpop.f32.mrb[0].mxu0
        %v511 = vadd.f32 0.0, %v510
        %v512 = vpop.f32.mrb[0].mxu0
        %513 = vmatprep.mubr.f32.mxu0 0.0
        %514 = vmatmul.mubr.f32.gmra.mrb[0].mxu0 %v248
        %v515 = vpop.f32.mrb[0].mxu0
        %v516 = vadd.f32 0.0, %v515
        %v517 = vpop.f32.mrb[0].mxu0
        %518 = vmatprep.mubr.f32.mxu0 0.0
        %519 = vmatmul.mubr.f32.gmra.mrb[0].mxu0 %v251
        %v520 = vpop.f32.mrb[0].mxu0
        %v521 = vadd.f32 0.0, %v520
        %v522 = vpop.f32.mrb[0].mxu0
        %523 = vmatprep.mubr.f32.mxu0 0.0
        %524 = vmatmul.mubr.f32.gmra.mrb[0].mxu0 %v254
        %v525 = vpop.f32.mrb[0].mxu0
        %v526 = vadd.f32 0.0, %v525
        %v527 = vpop.f32.mrb[0].mxu0
        %528 = vmatprep.mubr.f32.mxu0 0.0
        %529 = vmatmul.mubr.f32.gmra.mrb[0].mxu0 %v257
        %v530 = vpop.f32.mrb[0].mxu0
        %v531 = vadd.f32 0.0, %v530
        %v532 = vpop.f32.mrb[0].mxu0
        %533 = vmatprep.mubr.f32.mxu0 0.0
        %534 = vmatmul.mubr.f32.gmra.mrb[0].mxu0 %v260
        %v535 = vpop.f32.mrb[0].mxu0
        %v536 = vadd.f32 0.0, %v535
        %v537 = vpop.f32.mrb[0].mxu0
        %538 = vmatprep.mubr.f32.mxu0 0.0
        %539 = vmatmul.mubr.f32.gmra.mrb[0].mxu0 %v263
        %v540 = vpop.f32.mrb[0].mxu0
        %v541 = vadd.f32 0.0, %v540
        %v542 = vpop.f32.mrb[0].mxu0
        %543 = vmatprep.mubr.f32.mxu0 0.0
        %544 = vmatmul.mubr.f32.gmra.mrb[0].mxu0 %v266
        %v545 = vpop.f32.mrb[0].mxu0
        %v546 = vadd.f32 0.0, %v545
        %v547 = vpop.f32.mrb[0].mxu0
        %548 = vmatprep.mubr.f32.mxu0 0.0
        %549 = vmatmul.mubr.f32.gmra.mrb[0].mxu0 %v269
        %v550 = vpop.f32.mrb[0].mxu0
        %v551 = vadd.f32 0.0, %v550
        %v552 = vpop.f32.mrb[0].mxu0
        %553 = vmatprep.mubr.f32.mxu0 0.0
        %554 = vmatmul.mubr.f32.gmra.mrb[0].mxu0 %v272
        %v555 = vpop.f32.mrb[0].mxu0
        %v556 = vadd.f32 0.0, %v555
        %v557 = vpop.f32.mrb[0].mxu0
        %558 = vmatprep.mubr.f32.mxu0 0.0
        %559 = vmatmul.mubr.f32.gmra.mrb[0].mxu0 %v275
        %v560 = vpop.f32.mrb[0].mxu0
        %v561 = vadd.f32 0.0, %v560
        %v562 = vpop.f32.mrb[0].mxu0
        %563 = vmatprep.mubr.f32.mxu0 0.0
        %564 = vmatmul.mubr.f32.gmra.mrb[0].mxu0 %v278
        %v565 = vpop.f32.mrb[0].mxu0
        %v566 = vadd.f32 0.0, %v565
        %v567 = vpop.f32.mrb[0].mxu0
        %568 = vmatprep.mubr.f32.mxu0 0.0
        %569 = vmatmul.mubr.f32.gmra.mrb[0].mxu0 %v281
        %v570 = vpop.f32.mrb[0].mxu0
        %v571 = vadd.f32 0.0, %v570
        %v572 = vpop.f32.mrb[0].mxu0
        %573 = vmatprep.mubr.f32.mxu0 0.0
        %574 = vmatmul.mubr.f32.gmra.mrb[0].mxu0 %v284
        %v575 = vpop.f32.mrb[0].mxu0
        %v576 = vadd.f32 0.0, %v575
        %v577 = vpop.f32.mrb[0].mxu0
        %578 = vmatprep.mubr.f32.mxu0 0.0
        %579 = vmatmul.mubr.f32.gmra.mrb[0].mxu0 %v287
        %v580 = vpop.f32.mrb[0].mxu0
        %v581 = vadd.f32 0.0, %v580
        %v582 = vpop.f32.mrb[0].mxu0
        %583 = vmatprep.mubr.f32.mxu0 0.0
        %584 = vmatmul.mubr.f32.gmra.mrb[0].mxu0 %v290
        %v585 = vpop.f32.mrb[0].mxu0
        %v586 = vadd.f32 0.0, %v585
        %v587 = vpop.f32.mrb[0].mxu0
        %588 = vmatprep.mubr.f32.mxu0 0.0
        %589 = vmatmul.mubr.f32.gmra.mrb[0].mxu0 %v293
        %v590 = vpop.f32.mrb[0].mxu0
        %v591 = vadd.f32 0.0, %v590
        %v592 = vpop.f32.mrb[0].mxu0
        %593 = vmatprep.mubr.f32.mxu0 0.0
        %594 = vmatmul.mubr.f32.gmra.mrb[0].mxu0 %v296
        %v595 = vpop.f32.mrb[0].mxu0
        %v596 = vadd.f32 0.0, %v595
        %v597 = vpop.f32.mrb[0].mxu0
        %598 = vmatprep.mubr.f32.mxu0 0.0
        %599 = vmatmul.mubr.f32.gmra.mrb[0].mxu0 %v299
        %v600 = vpop.f32.mrb[0].mxu0
        %v601 = vadd.f32 0.0, %v600
        %v602 = vpop.f32.mrb[0].mxu0
        %603 = vmatprep.mubr.f32.mxu0 0.0
        %604 = vmatmul.mubr.f32.gmra.mrb[0].mxu0 %v302
        %v605 = vpop.f32.mrb[0].mxu0
        %v606 = vadd.f32 0.0, %v605
        %v607 = vpop.f32.mrb[0].mxu0
        %608 = vmatprep.mubr.f32.mxu0 0.0
        %609 = vmatmul.mubr.f32.gmra.mrb[0].mxu0 %v305
        %v610 = vpop.f32.mrb[0].mxu0
        %v611 = vadd.f32 0.0, %v610
        %v612 = vpop.f32.mrb[0].mxu0
        %613 = vmatprep.mubr.f32.mxu0 0.0
        %614 = vmatmul.mubr.f32.gmra.mrb[0].mxu0 %v308
        %v615 = vpop.f32.mrb[0].mxu0
        %v616 = vadd.f32 0.0, %v615
        %v617 = vpop.f32.mrb[0].mxu0
        %618 = vmatprep.mubr.f32.mxu0 0.0
        %619 = vmatmul.mubr.f32.gmra.mrb[0].mxu0 %v311
        %v620 = vpop.f32.mrb[0].mxu0
        %v621 = vadd.f32 0.0, %v620
        %v622 = vpop.f32.mrb[0].mxu0
        %623 = vmatprep.mubr.f32.mxu0 0.0
        %624 = vmatmul.mubr.f32.gmra.mrb[0].mxu0 %v314
        %v625 = vpop.f32.mrb[0].mxu0
        %v626 = vadd.f32 0.0, %v625
        %v627 = vpop.f32.mrb[0].mxu0
        %628 = vmatprep.mubr.f32.mxu0 0.0
        %629 = vmatmul.mubr.f32.gmra.mrb[0].mxu0 %v317
        %v630 = vpop.f32.mrb[0].mxu0
        %v631 = vadd.f32 0.0, %v630
        %v632 = vpop.f32.mrb[0].mxu0
        %633 = vmatprep.mubr.f32.mxu0 0.0
        %634 = vmatmul.mubr.f32.gmra.mrb[0].mxu0 %v320
        %v635 = vpop.f32.mrb[0].mxu0
        %v636 = vadd.f32 0.0, %v635
        %v637 = vpop.f32.mrb[0].mxu0
        %638 = vmatprep.mubr.f32.mxu0 0.0
        %639 = vmatmul.mubr.f32.gmra.mrb[0].mxu0 %v323
        %v640 = vpop.f32.mrb[0].mxu0
        %v641 = vadd.f32 0.0, %v640
        %v642 = vpop.f32.mrb[0].mxu0
        %643 = vmatprep.mubr.f32.mxu0 0.0
        %644 = vmatmul.mubr.f32.gmra.mrb[0].mxu0 %v326
        %v645 = vpop.f32.mrb[0].mxu0
        %v646 = vadd.f32 0.0, %v645
        %v647 = vpop.f32.mrb[0].mxu0
        %648 = vmatprep.mubr.f32.mxu0 0.0
        %649 = vmatmul.mubr.f32.gmra.mrb[0].mxu0 %v329
        %v650 = vpop.f32.mrb[0].mxu0
        %v651 = vadd.f32 0.0, %v650
        %v652 = vpop.f32.mrb[0].mxu0
        %653 = vmatprep.mubr.f32.mxu0 0.0
        %654 = vmatmul.mubr.f32.gmra.mrb[0].mxu0 %v332
        %v655 = vpop.f32.mrb[0].mxu0
        %v656 = vadd.f32 0.0, %v655
        %v657 = vpop.f32.mrb[0].mxu0
        %658 = vmatprep.mubr.f32.mxu0 0.0
        %659 = vmatmul.mubr.f32.gmra.mrb[0].mxu0 %v335
        %v660 = vpop.f32.mrb[0].mxu0
        %v661 = vadd.f32 0.0, %v660
        %v662 = vpop.f32.mrb[0].mxu0
        %663 = vmatprep.mubr.f32.mxu0 0.0
        %664 = vmatmul.mubr.f32.gmra.mrb[0].mxu0 %v338
        %v665 = vpop.f32.mrb[0].mxu0
        %v666 = vadd.f32 0.0, %v665
        %v667 = vpop.f32.mrb[0].mxu0
        %668 = vmatprep.mubr.f32.mxu0 0.0
        %669 = vmatmul.mubr.f32.gmra.mrb[0].mxu0 %v341
        %v670 = vpop.f32.mrb[0].mxu0
        %v671 = vadd.f32 0.0, %v670
        %v672 = vpop.f32.mrb[0].mxu0
        %673 = vmatprep.mubr.f32.mxu0 0.0
        %674 = vmatmul.mubr.f32.gmra.mrb[0].mxu0 %v344
        %v675 = vpop.f32.mrb[0].mxu0
        %v676 = vadd.f32 0.0, %v675
        %v677 = vpop.f32.mrb[0].mxu0
        %678 = vmatprep.mubr.f32.mxu0 0.0
        %679 = vmatmul.mubr.f32.gmra.mrb[0].mxu0 %v347
        %v680 = vpop.f32.mrb[0].mxu0
        %v681 = vadd.f32 0.0, %v680
        %v682 = vpop.f32.mrb[0].mxu0
        %683 = vmatprep.mubr.f32.mxu0 0.0
        %684 = vmatmul.mubr.f32.gmra.mrb[0].mxu0 %v350
        %v685 = vpop.f32.mrb[0].mxu0
        %v686 = vadd.f32 0.0, %v685
        %v687 = vpop.f32.mrb[0].mxu0
        %688 = vmatprep.mubr.f32.mxu0 0.0
        %689 = vmatmul.mubr.f32.gmra.mrb[0].mxu0 %v353
        %v690 = vpop.f32.mrb[0].mxu0
        %v691 = vadd.f32 0.0, %v690
        %v692 = vpop.f32.mrb[0].mxu0
        %693 = vmatprep.mubr.f32.mxu0 0.0
        %694 = vmatmul.mubr.f32.gmra.mrb[0].mxu0 %v356
        %v695 = vpop.f32.mrb[0].mxu0
        %v696 = vadd.f32 0.0, %v695
        %v697 = vpop.f32.mrb[0].mxu0
        %698 = vmatprep.mubr.f32.mxu0 0.0
        %699 = vmatmul.mubr.f32.gmra.mrb[0].mxu0 %v359
        %v700 = vpop.f32.mrb[0].mxu0
        %v701 = vadd.f32 0.0, %v700
        %v702 = vpop.f32.mrb[0].mxu0
        %703 = vmatprep.mubr.f32.mxu0 0.0
        %704 = vmatmul.mubr.f32.gmra.mrb[0].mxu0 %v362
        %v705 = vpop.f32.mrb[0].mxu0
        %v706 = vadd.f32 0.0, %v705
        %v707 = vpop.f32.mrb[0].mxu0
        %708 = vmatprep.mubr.f32.mxu0 0.0
        %709 = vmatmul.mubr.f32.gmra.mrb[0].mxu0 %v365
        %v710 = vpop.f32.mrb[0].mxu0
        %v711 = vadd.f32 0.0, %v710
        %v712 = vpop.f32.mrb[0].mxu0
        %713 = vmatprep.mubr.f32.mxu0 0.0
        %714 = vmatmul.mubr.f32.gmra.mrb[0].mxu0 %v368
        %v715 = vpop.f32.mrb[0].mxu0
        %v716 = vadd.f32 0.0, %v715
        %v717 = vpop.f32.mrb[0].mxu0
        %718 = vmatprep.mubr.f32.mxu0 0.0
        %719 = vmatmul.mubr.f32.gmra.mrb[0].mxu0 %v371
        %v720 = vpop.f32.mrb[0].mxu0
        %v721 = vadd.f32 0.0, %v720
        %v722 = vpop.f32.mrb[0].mxu0
        %723 = vmatprep.mubr.f32.mxu0 0.0
        %724 = vmatmul.mubr.f32.gmra.mrb[0].mxu0 %v374
        %v725 = vpop.f32.mrb[0].mxu0
        %v726 = vadd.f32 0.0, %v725
        %v727 = vpop.f32.mrb[0].mxu0
        %728 = vmatprep.mubr.f32.mxu0 0.0
        %729 = vmatmul.mubr.f32.gmra.mrb[0].mxu0 %v377
        %v730 = vpop.f32.mrb[0].mxu0
        %v731 = vadd.f32 0.0, %v730
        %v732 = vpop.f32.mrb[0].mxu0
        %733 = vmatprep.mubr.f32.mxu0 0.0
        %734 = vmatmul.mubr.f32.gmra.mrb[0].mxu0 %v380
        %v735 = vpop.f32.mrb[0].mxu0
        %v736 = vadd.f32 0.0, %v735
        %v737 = vpop.f32.mrb[0].mxu0
        %738 = vmatprep.mubr.f32.mxu0 0.0
        %739 = vmatmul.mubr.f32.gmra.mrb[0].mxu0 %v383
        %v740 = vpop.f32.mrb[0].mxu0
        %v741 = vadd.f32 0.0, %v740
        %v742 = vpop.f32.mrb[0].mxu0
        %743 = vmatprep.mubr.f32.mxu0 0.0
        %744 = vmatmul.mubr.f32.gmra.mrb[0].mxu0 %v386
        %v745 = vpop.f32.mrb[0].mxu0
        %v746 = vadd.f32 0.0, %v745
        %v747 = vpop.f32.mrb[0].mxu0
        %748 = vmatprep.mubr.f32.mxu0 0.0
        %749 = vmatmul.mubr.f32.gmra.mrb[0].mxu0 %v389
        %v750 = vpop.f32.mrb[0].mxu0
        %v751 = vadd.f32 0.0, %v750
        %v752 = vpop.f32.mrb[0].mxu0
        %753 = vmatprep.mubr.f32.mxu0 0.0
        %754 = vmatmul.mubr.f32.gmra.mrb[0].mxu0 %v392
        %v755 = vpop.f32.mrb[0].mxu0
        %v756 = vadd.f32 0.0, %v755
        %v757 = vpop.f32.mrb[0].mxu0
        %758 = vmatprep.mubr.f32.mxu0 0.0
        %759 = vmatmul.mubr.f32.gmra.mrb[0].mxu0 %v395
        %v760 = vpop.f32.mrb[0].mxu0
        %v761 = vadd.f32 0.0, %v760
        %v762 = vpop.f32.mrb[0].mxu0
        %763 = vmatprep.mubr.f32.mxu0 0.0
        %764 = vmatmul.mubr.f32.gmra.mrb[0].mxu0 %v398
        %v765 = vpop.f32.mrb[0].mxu0
        %v766 = vadd.f32 0.0, %v765
        %v767 = vpop.f32.mrb[0].mxu0
        %768 = vmatprep.mubr.f32.mxu0 0.0
        %769 = vmatmul.mubr.f32.gmra.mrb[0].mxu0 %v401
        %v770 = vpop.f32.mrb[0].mxu0
        %v771 = vadd.f32 0.0, %v770
        %v772 = vpop.f32.mrb[0].mxu0
        %773 = vmatprep.mubr.f32.mxu0 0.0
        %774 = vmatmul.mubr.f32.gmra.mrb[0].mxu0 %v404
        %v775 = vpop.f32.mrb[0].mxu0
        %v776 = vadd.f32 0.0, %v775
        %v777 = vpop.f32.mrb[0].mxu0
        %778 = vmatprep.mubr.f32.mxu0 0.0
        %779 = vmatmul.mubr.f32.gmra.mrb[0].mxu0 %v407
        %v780 = vpop.f32.mrb[0].mxu0
        %v781 = vadd.f32 0.0, %v780
        %v782 = vpop.f32.mrb[0].mxu0
        %783 = vmatprep.mubr.f32.mxu0 0.0
        %784 = vmatmul.mubr.f32.gmra.mrb[0].mxu0 %v410
        %v785 = vpop.f32.mrb[0].mxu0
        %v786 = vadd.f32 0.0, %v785
        %v787 = vpop.f32.mrb[0].mxu0
        %788 = vmatprep.mubr.f32.mxu0 0.0
        %789 = vmatmul.mubr.f32.gmra.mrb[0].mxu0 %v413
        %v790 = vpop.f32.mrb[0].mxu0
        %v791 = vadd.f32 0.0, %v790
        %v792 = vpop.f32.mrb[0].mxu0
        %793 = vmatprep.mubr.f32.mxu0 0.0
        %794 = vmatmul.mubr.f32.gmra.mrb[0].mxu0 %v416
        %v795 = vpop.f32.mrb[0].mxu0
        %v796 = vadd.f32 0.0, %v795
        %v797 = vpop.f32.mrb[0].mxu0
        %798 = vmatprep.mubr.f32.mxu0 0.0
        %799 = vmatmul.mubr.f32.gmra.mrb[0].mxu0 %v419
        %v800 = vpop.f32.mrb[0].mxu0
        %v801 = vadd.f32 0.0, %v800
        %v802 = vpop.f32.mrb[0].mxu0
        %803 = vmatprep.mubr.f32.mxu0 0.0
        %804 = vmatmul.mubr.f32.gmra.mrb[0].mxu0 %v422
        %v805 = vpop.f32.mrb[0].mxu0
        %v806 = vadd.f32 0.0, %v805
        %v807 = vpop.f32.mrb[0].mxu0
        %808 = vmatprep.mubr.f32.mxu0 0.0
        %809 = vmatmul.mubr.f32.gmra.mrb[0].mxu0 %v425
        %v810 = vpop.f32.mrb[0].mxu0
        %v811 = vadd.f32 0.0, %v810
        %v812 = vpop.f32.mrb[0].mxu0
        %813 = vmatprep.mubr.f32.mxu0 0.0
        %814 = vmatmul.mubr.f32.gmra.mrb[0].mxu0 %v428
        %v815 = vpop.f32.mrb[0].mxu0
        %v816 = vadd.f32 0.0, %v815
        %v817 = vpop.f32.mrb[0].mxu0
        %818 = vdwg.mxu0
        %vm819 = vcmask 130048
        %820 = vst.msk [vmem:[%s160] sm:$0xff] %vm819, %v501
        %821 = vst.msk [vmem:[%s160 + $0x8] sm:$0xff] %vm819, %v506
        %822 = vst.msk [vmem:[%s160 + $0x10] sm:$0xff] %vm819, %v511
        %823 = vst.msk [vmem:[%s160 + $0x18] sm:$0xff] %vm819, %v516
        %824 = vst.msk [vmem:[%s160 + $0x20] sm:$0xff] %vm819, %v521
        %825 = vst.msk [vmem:[%s160 + $0x28] sm:$0xff] %vm819, %v526
        %826 = vst.msk [vmem:[%s160 + $0x30] sm:$0xff] %vm819, %v531
        %827 = vst.msk [vmem:[%s160 + $0x38] sm:$0xff] %vm819, %v536
        %828 = vst.msk [vmem:[%s160 + $0x40] sm:$0xff] %vm819, %v541
        %829 = vst.msk [vmem:[%s160 + $0x48] sm:$0xff] %vm819, %v546
        %830 = vst.msk [vmem:[%s160 + $0x50] sm:$0xff] %vm819, %v551
        %831 = vst.msk [vmem:[%s160 + $0x58] sm:$0xff] %vm819, %v556
        %832 = vst.msk [vmem:[%s160 + $0x60] sm:$0xff] %vm819, %v561
        %833 = vst.msk [vmem:[%s160 + $0x68] sm:$0xff] %vm819, %v566
        %834 = vst.msk [vmem:[%s160 + $0x70] sm:$0xff] %vm819, %v571
        %835 = vst.msk [vmem:[%s160 + $0x78] sm:$0xff] %vm819, %v576
        %836 = vst.msk [vmem:[%s160 + $0x80] sm:$0xff] %vm819, %v581
        %837 = vst.msk [vmem:[%s160 + $0x88] sm:$0xff] %vm819, %v586
        %838 = vst.msk [vmem:[%s160 + $0x90] sm:$0xff] %vm819, %v591
        %839 = vst.msk [vmem:[%s160 + $0x98] sm:$0xff] %vm819, %v596
        %840 = vst.msk [vmem:[%s160 + $0xa0] sm:$0xff] %vm819, %v601
        %841 = vst.msk [vmem:[%s160 + $0xa8] sm:$0xff] %vm819, %v606
        %842 = vst.msk [vmem:[%s160 + $0xb0] sm:$0xff] %vm819, %v611
        %843 = vst.msk [vmem:[%s160 + $0xb8] sm:$0xff] %vm819, %v616
        %844 = vst.msk [vmem:[%s160 + $0xc0] sm:$0xff] %vm819, %v621
        %845 = vst.msk [vmem:[%s160 + $0xc8] sm:$0xff] %vm819, %v626
        %846 = vst.msk [vmem:[%s160 + $0xd0] sm:$0xff] %vm819, %v631
        %847 = vst.msk [vmem:[%s160 + $0xd8] sm:$0xff] %vm819, %v636
        %848 = vst.msk [vmem:[%s160 + $0xe0] sm:$0xff] %vm819, %v641
        %849 = vst.msk [vmem:[%s160 + $0xe8] sm:$0xff] %vm819, %v646
        %850 = vst.msk [vmem:[%s160 + $0xf0] sm:$0xff] %vm819, %v651
        %851 = vst.msk [vmem:[%s160 + $0xf8] sm:$0xff] %vm819, %v656
        %852 = vst.msk [vmem:[%s160 + $0x100] sm:$0xff] %vm819, %v661
        %853 = vst.msk [vmem:[%s160 + $0x108] sm:$0xff] %vm819, %v666
        %854 = vst.msk [vmem:[%s160 + $0x110] sm:$0xff] %vm819, %v671
        %855 = vst.msk [vmem:[%s160 + $0x118] sm:$0xff] %vm819, %v676
        %856 = vst.msk [vmem:[%s160 + $0x120] sm:$0xff] %vm819, %v681
        %857 = vst.msk [vmem:[%s160 + $0x128] sm:$0xff] %vm819, %v686
        %858 = vst.msk [vmem:[%s160 + $0x130] sm:$0xff] %vm819, %v691
        %859 = vst.msk [vmem:[%s160 + $0x138] sm:$0xff] %vm819, %v696
        %860 = vst.msk [vmem:[%s160 + $0x140] sm:$0xff] %vm819, %v701
        %861 = vst.msk [vmem:[%s160 + $0x148] sm:$0xff] %vm819, %v706
        %862 = vst.msk [vmem:[%s160 + $0x150] sm:$0xff] %vm819, %v711
        %863 = vst.msk [vmem:[%s160 + $0x158] sm:$0xff] %vm819, %v716
        %864 = vst.msk [vmem:[%s160 + $0x160] sm:$0xff] %vm819, %v721
        %865 = vst.msk [vmem:[%s160 + $0x168] sm:$0xff] %vm819, %v726
        %866 = vst.msk [vmem:[%s160 + $0x170] sm:$0xff] %vm819, %v731
        %867 = vst.msk [vmem:[%s160 + $0x178] sm:$0xff] %vm819, %v736
        %868 = vst.msk [vmem:[%s160 + $0x180] sm:$0xff] %vm819, %v741
        %869 = vst.msk [vmem:[%s160 + $0x188] sm:$0xff] %vm819, %v746
        %870 = vst.msk [vmem:[%s160 + $0x190] sm:$0xff] %vm819, %v751
        %871 = vst.msk [vmem:[%s160 + $0x198] sm:$0xff] %vm819, %v756
        %872 = vst.msk [vmem:[%s160 + $0x1a0] sm:$0xff] %vm819, %v761
        %873 = vst.msk [vmem:[%s160 + $0x1a8] sm:$0xff] %vm819, %v766
        %874 = vst.msk [vmem:[%s160 + $0x1b0] sm:$0xff] %vm819, %v771
        %875 = vst.msk [vmem:[%s160 + $0x1b8] sm:$0xff] %vm819, %v776
        %876 = vst.msk [vmem:[%s160 + $0x1c0] sm:$0xff] %vm819, %v781
        %877 = vst.msk [vmem:[%s160 + $0x1c8] sm:$0xff] %vm819, %v786
        %878 = vst.msk [vmem:[%s160 + $0x1d0] sm:$0xff] %vm819, %v791
        %879 = vst.msk [vmem:[%s160 + $0x1d8] sm:$0xff] %vm819, %v796
        %880 = vst.msk [vmem:[%s160 + $0x1e0] sm:$0xff] %vm819, %v801
        %881 = vst.msk [vmem:[%s160 + $0x1e8] sm:$0xff] %vm819, %v806
        %882 = vst.msk [vmem:[%s160 + $0x1f0] sm:$0xff] %vm819, %v811
        %883 = vst.msk [vmem:[%s160 + $0x1f8] sm:$0xff] %vm819, %v816
        %s884 = sand.u32 %s87, 1
        %s885 = sand.u32 %s87, 1
        %s886 = smul.addr %s885, 512
        %s887 = scalar_lea.vmem [#allocation2], %s886
        // Predicated region
        $region29: #{tpu_custom_call.1} parent=27 // pred_check
          %p888 = pneg %p97
        $region30: #{tpu_custom_call.1} parent=27 // pred_check_branch
          %890 = sbr.rel (%p888) target = $region32
        $region31: #{tpu_custom_call.1} parent=27 // pred_region
          %s891 = smul.u32 32, %s17
          %s892 = smul.addr %s18, 2
          %s893 = smul.addr %s891, 4
          %s894 = sadd.s32 %s892, %s893
          %s895 = smul.addr %s894, 8
          %s896 = scalar_lea.vmem %s2, %s895
          // Predicated region
          $region33: #{tpu_custom_call.1} parent=31 // pred_check
            _
          $region34: #{tpu_custom_call.1} parent=31 // pred_check_branch
            %898 = sbr.rel (0) target = $region36
          $region35: #{tpu_custom_call.1} parent=31 // pred_region
            // Predicated region
            $region37: #{tpu_custom_call.1} parent=35 // pred_check
              _
            $region38: #{tpu_custom_call.1} parent=35 // pred_check_branch
              %900 = sbr.rel (0) target = $region40
            $region39: #{tpu_custom_call.1} parent=35 // pred_region
              // Predicated region
              $region52: #{tpu_custom_call.1} parent=39 // pred_check
                _
              $region53: #{tpu_custom_call.1} parent=39 // pred_check_branch
                %1041 = sbr.rel (0) target = $region55
              $region54: #{tpu_custom_call.1} parent=39 // pred_region
                loop: start=0, step=1, limit=1
                $region56: #{tpu_custom_call.1} parent=54 // loop_pre_header
                  _
                $region57: #{tpu_custom_call.1} parent=54 // loop_header
                  %s1043 = sphi 0, %s1047
                  %p1044 = scmp.ge.s32.totalorder %s1043, 1
                  %s1048 = sphi %s887, %s887
                  %s1049 = sphi %s896, %s896
                $region58: #{tpu_custom_call.1} parent=54 // loop_header_branch
                  %1046 = sbr.rel (%p1044) target = $region62
                $region59: #{tpu_custom_call.1} parent=54 // loop_body
                  %v1050 = vld [vmem:[%s1048] sm:$0xff]
                  %1051 = vst [vmem:[%s1049] sm:$0xff] %v1050
                  %v1052 = vld [vmem:[%s1048 + $0x8] sm:$0xff]
                  %1053 = vst [vmem:[%s1049 + $0x8] sm:$0xff] %v1052
                  %v1054 = vld [vmem:[%s1048 + $0x10] sm:$0xff]
                  %1055 = vst [vmem:[%s1049 + $0x20] sm:$0xff] %v1054
                  %v1056 = vld [vmem:[%s1048 + $0x18] sm:$0xff]
                  %1057 = vst [vmem:[%s1049 + $0x28] sm:$0xff] %v1056
                  %v1058 = vld [vmem:[%s1048 + $0x20] sm:$0xff]
                  %1059 = vst [vmem:[%s1049 + $0x40] sm:$0xff] %v1058
                  %v1060 = vld [vmem:[%s1048 + $0x28] sm:$0xff]
                  %1061 = vst [vmem:[%s1049 + $0x48] sm:$0xff] %v1060
                  %v1062 = vld [vmem:[%s1048 + $0x30] sm:$0xff]
                  %1063 = vst [vmem:[%s1049 + $0x60] sm:$0xff] %v1062
                  %v1064 = vld [vmem:[%s1048 + $0x38] sm:$0xff]
                  %1065 = vst [vmem:[%s1049 + $0x68] sm:$0xff] %v1064
                  %v1066 = vld [vmem:[%s1048 + $0x40] sm:$0xff]
                  %1067 = vst [vmem:[%s1049 + $0x80] sm:$0xff] %v1066
                  %v1068 = vld [vmem:[%s1048 + $0x48] sm:$0xff]
                  %1069 = vst [vmem:[%s1049 + $0x88] sm:$0xff] %v1068
                  %v1070 = vld [vmem:[%s1048 + $0x50] sm:$0xff]
                  %1071 = vst [vmem:[%s1049 + $0xa0] sm:$0xff] %v1070
                  %v1072 = vld [vmem:[%s1048 + $0x58] sm:$0xff]
                  %1073 = vst [vmem:[%s1049 + $0xa8] sm:$0xff] %v1072
                  %v1074 = vld [vmem:[%s1048 + $0x60] sm:$0xff]
                  %1075 = vst [vmem:[%s1049 + $0xc0] sm:$0xff] %v1074
                  %v1076 = vld [vmem:[%s1048 + $0x68] sm:$0xff]
                  %1077 = vst [vmem:[%s1049 + $0xc8] sm:$0xff] %v1076
                  %v1078 = vld [vmem:[%s1048 + $0x70] sm:$0xff]
                  %1079 = vst [vmem:[%s1049 + $0xe0] sm:$0xff] %v1078
                  %v1080 = vld [vmem:[%s1048 + $0x78] sm:$0xff]
                  %1081 = vst [vmem:[%s1049 + $0xe8] sm:$0xff] %v1080
                  %v1082 = vld [vmem:[%s1048 + $0x80] sm:$0xff]
                  %1083 = vst [vmem:[%s1049 + $0x100] sm:$0xff] %v1082
                  %v1084 = vld [vmem:[%s1048 + $0x88] sm:$0xff]
                  %1085 = vst [vmem:[%s1049 + $0x108] sm:$0xff] %v1084
                  %v1086 = vld [vmem:[%s1048 + $0x90] sm:$0xff]
                  %1087 = vst [vmem:[%s1049 + $0x120] sm:$0xff] %v1086
                  %v1088 = vld [vmem:[%s1048 + $0x98] sm:$0xff]
                  %1089 = vst [vmem:[%s1049 + $0x128] sm:$0xff] %v1088
                  %v1090 = vld [vmem:[%s1048 + $0xa0] sm:$0xff]
                  %1091 = vst [vmem:[%s1049 + $0x140] sm:$0xff] %v1090
                  %v1092 = vld [vmem:[%s1048 + $0xa8] sm:$0xff]
                  %1093 = vst [vmem:[%s1049 + $0x148] sm:$0xff] %v1092
                  %v1094 = vld [vmem:[%s1048 + $0xb0] sm:$0xff]
                  %1095 = vst [vmem:[%s1049 + $0x160] sm:$0xff] %v1094
                  %v1096 = vld [vmem:[%s1048 + $0xb8] sm:$0xff]
                  %1097 = vst [vmem:[%s1049 + $0x168] sm:$0xff] %v1096
                  %v1098 = vld [vmem:[%s1048 + $0xc0] sm:$0xff]
                  %1099 = vst [vmem:[%s1049 + $0x180] sm:$0xff] %v1098
                  %v1100 = vld [vmem:[%s1048 + $0xc8] sm:$0xff]
                  %1101 = vst [vmem:[%s1049 + $0x188] sm:$0xff] %v1100
                  %v1102 = vld [vmem:[%s1048 + $0xd0] sm:$0xff]
                  %1103 = vst [vmem:[%s1049 + $0x1a0] sm:$0xff] %v1102
                  %v1104 = vld [vmem:[%s1048 + $0xd8] sm:$0xff]
                  %1105 = vst [vmem:[%s1049 + $0x1a8] sm:$0xff] %v1104
                  %v1106 = vld [vmem:[%s1048 + $0xe0] sm:$0xff]
                  %1107 = vst [vmem:[%s1049 + $0x1c0] sm:$0xff] %v1106
                  %v1108 = vld [vmem:[%s1048 + $0xe8] sm:$0xff]
                  %1109 = vst [vmem:[%s1049 + $0x1c8] sm:$0xff] %v1108
                  %v1110 = vld [vmem:[%s1048 + $0xf0] sm:$0xff]
                  %1111 = vst [vmem:[%s1049 + $0x1e0] sm:$0xff] %v1110
                  %v1112 = vld [vmem:[%s1048 + $0xf8] sm:$0xff]
                  %1113 = vst [vmem:[%s1049 + $0x1e8] sm:$0xff] %v1112
                  %v1114 = vld [vmem:[%s1048 + $0x100] sm:$0xff]
                  %1115 = vst [vmem:[%s1049 + $0x200] sm:$0xff] %v1114
                  %v1116 = vld [vmem:[%s1048 + $0x108] sm:$0xff]
                  %1117 = vst [vmem:[%s1049 + $0x208] sm:$0xff] %v1116
                  %v1118 = vld [vmem:[%s1048 + $0x110] sm:$0xff]
                  %1119 = vst [vmem:[%s1049 + $0x220] sm:$0xff] %v1118
                  %v1120 = vld [vmem:[%s1048 + $0x118] sm:$0xff]
                  %1121 = vst [vmem:[%s1049 + $0x228] sm:$0xff] %v1120
                  %v1122 = vld [vmem:[%s1048 + $0x120] sm:$0xff]
                  %1123 = vst [vmem:[%s1049 + $0x240] sm:$0xff] %v1122
                  %v1124 = vld [vmem:[%s1048 + $0x128] sm:$0xff]
                  %1125 = vst [vmem:[%s1049 + $0x248] sm:$0xff] %v1124
                  %v1126 = vld [vmem:[%s1048 + $0x130] sm:$0xff]
                  %1127 = vst [vmem:[%s1049 + $0x260] sm:$0xff] %v1126
                  %v1128 = vld [vmem:[%s1048 + $0x138] sm:$0xff]
                  %1129 = vst [vmem:[%s1049 + $0x268] sm:$0xff] %v1128
                  %v1130 = vld [vmem:[%s1048 + $0x140] sm:$0xff]
                  %1131 = vst [vmem:[%s1049 + $0x280] sm:$0xff] %v1130
                  %v1132 = vld [vmem:[%s1048 + $0x148] sm:$0xff]
                  %1133 = vst [vmem:[%s1049 + $0x288] sm:$0xff] %v1132
                  %v1134 = vld [vmem:[%s1048 + $0x150] sm:$0xff]
                  %1135 = vst [vmem:[%s1049 + $0x2a0] sm:$0xff] %v1134
                  %v1136 = vld [vmem:[%s1048 + $0x158] sm:$0xff]
                  %1137 = vst [vmem:[%s1049 + $0x2a8] sm:$0xff] %v1136
                  %v1138 = vld [vmem:[%s1048 + $0x160] sm:$0xff]
                  %1139 = vst [vmem:[%s1049 + $0x2c0] sm:$0xff] %v1138
                  %v1140 = vld [vmem:[%s1048 + $0x168] sm:$0xff]
                  %1141 = vst [vmem:[%s1049 + $0x2c8] sm:$0xff] %v1140
                  %v1142 = vld [vmem:[%s1048 + $0x170] sm:$0xff]
                  %1143 = vst [vmem:[%s1049 + $0x2e0] sm:$0xff] %v1142
                  %v1144 = vld [vmem:[%s1048 + $0x178] sm:$0xff]
                  %1145 = vst [vmem:[%s1049 + $0x2e8] sm:$0xff] %v1144
                  %v1146 = vld [vmem:[%s1048 + $0x180] sm:$0xff]
                  %1147 = vst [vmem:[%s1049 + $0x300] sm:$0xff] %v1146
                  %v1148 = vld [vmem:[%s1048 + $0x188] sm:$0xff]
                  %1149 = vst [vmem:[%s1049 + $0x308] sm:$0xff] %v1148
                  %v1150 = vld [vmem:[%s1048 + $0x190] sm:$0xff]
                  %1151 = vst [vmem:[%s1049 + $0x320] sm:$0xff] %v1150
                  %v1152 = vld [vmem:[%s1048 + $0x198] sm:$0xff]
                  %1153 = vst [vmem:[%s1049 + $0x328] sm:$0xff] %v1152
                  %v1154 = vld [vmem:[%s1048 + $0x1a0] sm:$0xff]
                  %1155 = vst [vmem:[%s1049 + $0x340] sm:$0xff] %v1154
                  %v1156 = vld [vmem:[%s1048 + $0x1a8] sm:$0xff]
                  %1157 = vst [vmem:[%s1049 + $0x348] sm:$0xff] %v1156
                  %v1158 = vld [vmem:[%s1048 + $0x1b0] sm:$0xff]
                  %1159 = vst [vmem:[%s1049 + $0x360] sm:$0xff] %v1158
                  %v1160 = vld [vmem:[%s1048 + $0x1b8] sm:$0xff]
                  %1161 = vst [vmem:[%s1049 + $0x368] sm:$0xff] %v1160
                  %v1162 = vld [vmem:[%s1048 + $0x1c0] sm:$0xff]
                  %1163 = vst [vmem:[%s1049 + $0x380] sm:$0xff] %v1162
                  %v1164 = vld [vmem:[%s1048 + $0x1c8] sm:$0xff]
                  %1165 = vst [vmem:[%s1049 + $0x388] sm:$0xff] %v1164
                  %v1166 = vld [vmem:[%s1048 + $0x1d0] sm:$0xff]
                  %1167 = vst [vmem:[%s1049 + $0x3a0] sm:$0xff] %v1166
                  %v1168 = vld [vmem:[%s1048 + $0x1d8] sm:$0xff]
                  %1169 = vst [vmem:[%s1049 + $0x3a8] sm:$0xff] %v1168
                  %v1170 = vld [vmem:[%s1048 + $0x1e0] sm:$0xff]
                  %1171 = vst [vmem:[%s1049 + $0x3c0] sm:$0xff] %v1170
                  %v1172 = vld [vmem:[%s1048 + $0x1e8] sm:$0xff]
                  %1173 = vst [vmem:[%s1049 + $0x3c8] sm:$0xff] %v1172
                  %v1174 = vld [vmem:[%s1048 + $0x1f0] sm:$0xff]
                  %1175 = vst [vmem:[%s1049 + $0x3e0] sm:$0xff] %v1174
                  %v1176 = vld [vmem:[%s1048 + $0x1f8] sm:$0xff]
                  %1177 = vst [vmem:[%s1049 + $0x3e8] sm:$0xff] %v1176
                $region60: #{tpu_custom_call.1} parent=54 // loop_footer
                  %s1047 = sadd.s32 1, %s1043
                $region61: #{tpu_custom_call.1} parent=54 // loop_footer_branch
                  %1042 = sbr.rel target = $region57
                $region62: #{tpu_custom_call.1} parent=54 // loop_exit
                  _
              $region55: #{tpu_custom_call.1} parent=39 // pred_fallthru
                _
              // Predicated region
              $region63: #{tpu_custom_call.1} parent=39 // pred_check
                _
              $region64: #{tpu_custom_call.1} parent=39 // pred_check_branch
                %1179 = sbr.rel target = $region66
              $region65: #{tpu_custom_call.1} parent=39 // pred_region
                _
              $region66: #{tpu_custom_call.1} parent=39 // pred_fallthru
                _
            $region40: #{tpu_custom_call.1} parent=35 // pred_fallthru
              _
            // Predicated region
            $region41: #{tpu_custom_call.1} parent=35 // pred_check
              _
            $region42: #{tpu_custom_call.1} parent=35 // pred_check_branch
              %902 = sbr.rel target = $region44
            $region43: #{tpu_custom_call.1} parent=35 // pred_region
              loop: start=0, step=1, limit=1
              $region45: #{tpu_custom_call.1} parent=43 // loop_pre_header
                _
              $region46: #{tpu_custom_call.1} parent=43 // loop_header
                %s905 = sphi 0, %s909
                %p906 = scmp.ge.s32.totalorder %s905, 1
                %s910 = sphi %s887, %s887
                %s911 = sphi %s896, %s896
              $region47: #{tpu_custom_call.1} parent=43 // loop_header_branch
                %908 = sbr.rel (%p906) target = $region51
              $region48: #{tpu_custom_call.1} parent=43 // loop_body
                %v912 = vld [vmem:[%s910] sm:$0xff]
                %913 = vst [vmem:[%s911] sm:$0xff] %v912
                %v914 = vld [vmem:[%s910 + $0x8] sm:$0xff]
                %915 = vst [vmem:[%s911 + $0x8] sm:$0xff] %v914
                %v916 = vld [vmem:[%s910 + $0x10] sm:$0xff]
                %917 = vst [vmem:[%s911 + $0x20] sm:$0xff] %v916
                %v918 = vld [vmem:[%s910 + $0x18] sm:$0xff]
                %919 = vst [vmem:[%s911 + $0x28] sm:$0xff] %v918
                %v920 = vld [vmem:[%s910 + $0x20] sm:$0xff]
                %921 = vst [vmem:[%s911 + $0x40] sm:$0xff] %v920
                %v922 = vld [vmem:[%s910 + $0x28] sm:$0xff]
                %923 = vst [vmem:[%s911 + $0x48] sm:$0xff] %v922
                %v924 = vld [vmem:[%s910 + $0x30] sm:$0xff]
                %925 = vst [vmem:[%s911 + $0x60] sm:$0xff] %v924
                %v926 = vld [vmem:[%s910 + $0x38] sm:$0xff]
                %927 = vst [vmem:[%s911 + $0x68] sm:$0xff] %v926
                %v928 = vld [vmem:[%s910 + $0x40] sm:$0xff]
                %929 = vst [vmem:[%s911 + $0x80] sm:$0xff] %v928
                %v930 = vld [vmem:[%s910 + $0x48] sm:$0xff]
                %931 = vst [vmem:[%s911 + $0x88] sm:$0xff] %v930
                %v932 = vld [vmem:[%s910 + $0x50] sm:$0xff]
                %933 = vst [vmem:[%s911 + $0xa0] sm:$0xff] %v932
                %v934 = vld [vmem:[%s910 + $0x58] sm:$0xff]
                %935 = vst [vmem:[%s911 + $0xa8] sm:$0xff] %v934
                %v936 = vld [vmem:[%s910 + $0x60] sm:$0xff]
                %937 = vst [vmem:[%s911 + $0xc0] sm:$0xff] %v936
                %v938 = vld [vmem:[%s910 + $0x68] sm:$0xff]
                %939 = vst [vmem:[%s911 + $0xc8] sm:$0xff] %v938
                %v940 = vld [vmem:[%s910 + $0x70] sm:$0xff]
                %941 = vst [vmem:[%s911 + $0xe0] sm:$0xff] %v940
                %v942 = vld [vmem:[%s910 + $0x78] sm:$0xff]
                %943 = vst [vmem:[%s911 + $0xe8] sm:$0xff] %v942
                %v944 = vld [vmem:[%s910 + $0x80] sm:$0xff]
                %945 = vst [vmem:[%s911 + $0x100] sm:$0xff] %v944
                %v946 = vld [vmem:[%s910 + $0x88] sm:$0xff]
                %947 = vst [vmem:[%s911 + $0x108] sm:$0xff] %v946
                %v948 = vld [vmem:[%s910 + $0x90] sm:$0xff]
                %949 = vst [vmem:[%s911 + $0x120] sm:$0xff] %v948
                %v950 = vld [vmem:[%s910 + $0x98] sm:$0xff]
                %951 = vst [vmem:[%s911 + $0x128] sm:$0xff] %v950
                %v952 = vld [vmem:[%s910 + $0xa0] sm:$0xff]
                %953 = vst [vmem:[%s911 + $0x140] sm:$0xff] %v952
                %v954 = vld [vmem:[%s910 + $0xa8] sm:$0xff]
                %955 = vst [vmem:[%s911 + $0x148] sm:$0xff] %v954
                %v956 = vld [vmem:[%s910 + $0xb0] sm:$0xff]
                %957 = vst [vmem:[%s911 + $0x160] sm:$0xff] %v956
                %v958 = vld [vmem:[%s910 + $0xb8] sm:$0xff]
                %959 = vst [vmem:[%s911 + $0x168] sm:$0xff] %v958
                %v960 = vld [vmem:[%s910 + $0xc0] sm:$0xff]
                %961 = vst [vmem:[%s911 + $0x180] sm:$0xff] %v960
                %v962 = vld [vmem:[%s910 + $0xc8] sm:$0xff]
                %963 = vst [vmem:[%s911 + $0x188] sm:$0xff] %v962
                %v964 = vld [vmem:[%s910 + $0xd0] sm:$0xff]
                %965 = vst [vmem:[%s911 + $0x1a0] sm:$0xff] %v964
                %v966 = vld [vmem:[%s910 + $0xd8] sm:$0xff]
                %967 = vst [vmem:[%s911 + $0x1a8] sm:$0xff] %v966
                %v968 = vld [vmem:[%s910 + $0xe0] sm:$0xff]
                %969 = vst [vmem:[%s911 + $0x1c0] sm:$0xff] %v968
                %v970 = vld [vmem:[%s910 + $0xe8] sm:$0xff]
                %971 = vst [vmem:[%s911 + $0x1c8] sm:$0xff] %v970
                %v972 = vld [vmem:[%s910 + $0xf0] sm:$0xff]
                %973 = vst [vmem:[%s911 + $0x1e0] sm:$0xff] %v972
                %v974 = vld [vmem:[%s910 + $0xf8] sm:$0xff]
                %975 = vst [vmem:[%s911 + $0x1e8] sm:$0xff] %v974
                %v976 = vld [vmem:[%s910 + $0x100] sm:$0xff]
                %977 = vst [vmem:[%s911 + $0x200] sm:$0xff] %v976
                %v978 = vld [vmem:[%s910 + $0x108] sm:$0xff]
                %979 = vst [vmem:[%s911 + $0x208] sm:$0xff] %v978
                %v980 = vld [vmem:[%s910 + $0x110] sm:$0xff]
                %981 = vst [vmem:[%s911 + $0x220] sm:$0xff] %v980
                %v982 = vld [vmem:[%s910 + $0x118] sm:$0xff]
                %983 = vst [vmem:[%s911 + $0x228] sm:$0xff] %v982
                %v984 = vld [vmem:[%s910 + $0x120] sm:$0xff]
                %985 = vst [vmem:[%s911 + $0x240] sm:$0xff] %v984
                %v986 = vld [vmem:[%s910 + $0x128] sm:$0xff]
                %987 = vst [vmem:[%s911 + $0x248] sm:$0xff] %v986
                %v988 = vld [vmem:[%s910 + $0x130] sm:$0xff]
                %989 = vst [vmem:[%s911 + $0x260] sm:$0xff] %v988
                %v990 = vld [vmem:[%s910 + $0x138] sm:$0xff]
                %991 = vst [vmem:[%s911 + $0x268] sm:$0xff] %v990
                %v992 = vld [vmem:[%s910 + $0x140] sm:$0xff]
                %993 = vst [vmem:[%s911 + $0x280] sm:$0xff] %v992
                %v994 = vld [vmem:[%s910 + $0x148] sm:$0xff]
                %995 = vst [vmem:[%s911 + $0x288] sm:$0xff] %v994
                %v996 = vld [vmem:[%s910 + $0x150] sm:$0xff]
                %997 = vst [vmem:[%s911 + $0x2a0] sm:$0xff] %v996
                %v998 = vld [vmem:[%s910 + $0x158] sm:$0xff]
                %999 = vst [vmem:[%s911 + $0x2a8] sm:$0xff] %v998
                %v1000 = vld [vmem:[%s910 + $0x160] sm:$0xff]
                %1001 = vst [vmem:[%s911 + $0x2c0] sm:$0xff] %v1000
                %v1002 = vld [vmem:[%s910 + $0x168] sm:$0xff]
                %1003 = vst [vmem:[%s911 + $0x2c8] sm:$0xff] %v1002
                %v1004 = vld [vmem:[%s910 + $0x170] sm:$0xff]
                %1005 = vst [vmem:[%s911 + $0x2e0] sm:$0xff] %v1004
                %v1006 = vld [vmem:[%s910 + $0x178] sm:$0xff]
                %1007 = vst [vmem:[%s911 + $0x2e8] sm:$0xff] %v1006
                %v1008 = vld [vmem:[%s910 + $0x180] sm:$0xff]
                %1009 = vst [vmem:[%s911 + $0x300] sm:$0xff] %v1008
                %v1010 = vld [vmem:[%s910 + $0x188] sm:$0xff]
                %1011 = vst [vmem:[%s911 + $0x308] sm:$0xff] %v1010
                %v1012 = vld [vmem:[%s910 + $0x190] sm:$0xff]
                %1013 = vst [vmem:[%s911 + $0x320] sm:$0xff] %v1012
                %v1014 = vld [vmem:[%s910 + $0x198] sm:$0xff]
                %1015 = vst [vmem:[%s911 + $0x328] sm:$0xff] %v1014
                %v1016 = vld [vmem:[%s910 + $0x1a0] sm:$0xff]
                %1017 = vst [vmem:[%s911 + $0x340] sm:$0xff] %v1016
                %v1018 = vld [vmem:[%s910 + $0x1a8] sm:$0xff]
                %1019 = vst [vmem:[%s911 + $0x348] sm:$0xff] %v1018
                %v1020 = vld [vmem:[%s910 + $0x1b0] sm:$0xff]
                %1021 = vst [vmem:[%s911 + $0x360] sm:$0xff] %v1020
                %v1022 = vld [vmem:[%s910 + $0x1b8] sm:$0xff]
                %1023 = vst [vmem:[%s911 + $0x368] sm:$0xff] %v1022
                %v1024 = vld [vmem:[%s910 + $0x1c0] sm:$0xff]
                %1025 = vst [vmem:[%s911 + $0x380] sm:$0xff] %v1024
                %v1026 = vld [vmem:[%s910 + $0x1c8] sm:$0xff]
                %1027 = vst [vmem:[%s911 + $0x388] sm:$0xff] %v1026
                %v1028 = vld [vmem:[%s910 + $0x1d0] sm:$0xff]
                %1029 = vst [vmem:[%s911 + $0x3a0] sm:$0xff] %v1028
                %v1030 = vld [vmem:[%s910 + $0x1d8] sm:$0xff]
                %1031 = vst [vmem:[%s911 + $0x3a8] sm:$0xff] %v1030
                %v1032 = vld [vmem:[%s910 + $0x1e0] sm:$0xff]
                %1033 = vst [vmem:[%s911 + $0x3c0] sm:$0xff] %v1032
                %v1034 = vld [vmem:[%s910 + $0x1e8] sm:$0xff]
                %1035 = vst [vmem:[%s911 + $0x3c8] sm:$0xff] %v1034
                %v1036 = vld [vmem:[%s910 + $0x1f0] sm:$0xff]
                %1037 = vst [vmem:[%s911 + $0x3e0] sm:$0xff] %v1036
                %v1038 = vld [vmem:[%s910 + $0x1f8] sm:$0xff]
                %1039 = vst [vmem:[%s911 + $0x3e8] sm:$0xff] %v1038
              $region49: #{tpu_custom_call.1} parent=43 // loop_footer
                %s909 = sadd.s32 1, %s905
              $region50: #{tpu_custom_call.1} parent=43 // loop_footer_branch
                %904 = sbr.rel target = $region46
              $region51: #{tpu_custom_call.1} parent=43 // loop_exit
                _
            $region44: #{tpu_custom_call.1} parent=35 // pred_fallthru
              _
          $region36: #{tpu_custom_call.1} parent=31 // pred_fallthru
            _
          %1180 = vnop
        $region32: #{tpu_custom_call.1} parent=27 // pred_fallthru
          _
      $region28: #{tpu_custom_call.1} parent=5 // pred_fallthru
        _
      %p1181 = scmp.le.s32.totalorder 2, %s8
      // Predicated region
      $region67: #{tpu_custom_call.1} parent=5 // pred_check
        %p1182 = pneg %p1181
      $region68: #{tpu_custom_call.1} parent=5 // pred_check_branch
        %1184 = sbr.rel (%p1182) target = $region70
      $region69: #{tpu_custom_call.1} parent=5 // pred_region
        %s1185 = ssub.s32 %s8, 2
        // Predicated region
        $region71: #{tpu_custom_call.1} parent=69 // pred_check
          %p1186 = pneg %p103
        $region72: #{tpu_custom_call.1} parent=69 // pred_check_branch
          %1188 = sbr.rel (%p1186) target = $region74
        $region73: #{tpu_custom_call.1} parent=69 // pred_region
          %s1189 = sand.u32 %s88, 1
          %s1190 = sand.u32 %s88, 1
          %s1191 = smul.addr %s1190, 512
          %s1192 = scalar_lea.vmem [#allocation2], %s1191
        $region74: #{tpu_custom_call.1} parent=69 // pred_fallthru
          _
      $region70: #{tpu_custom_call.1} parent=5 // pred_fallthru
        _
    $region6: #{tpu_custom_call.1} parent=1 // loop_footer
      %s12 = sadd.s32 1, %s8
    $region7: #{tpu_custom_call.1} parent=1 // loop_footer_branch
      %7 = sbr.rel target = $region3
    $region8: #{tpu_custom_call.1} parent=1 // loop_exit
      _

</llo_original>
